<compile_context>
chip_gen: v7x
topology: tpu7x:2x2x1
jax: 0.10.0
libtpu: 0.0.40
codegen_flags: <defaults>
</compile_context>

<pallas_src>
import functools

import jax
import jax.numpy as jnp
from jax.experimental import pallas as pl
from jax.experimental.pallas import tpu as pltpu

_LANE = 128


def _iou_loss_tile(pred_ref, tgt_ref, *, loss_type):
    """Compute the per-box loss for one (TR, 128) tile of boxes."""
    # each component is a dense (TR, 128) f32 tile
    px = pred_ref[0]
    py = pred_ref[1]
    pw = pred_ref[2]
    ph = pred_ref[3]
    tx = tgt_ref[0]
    ty = tgt_ref[1]
    tw = tgt_ref[2]
    th = tgt_ref[3]

    # hoisted half-extents and the four corner coordinates (shared between the
    # intersection box and the enclosing box)
    phw = pw * 0.5
    phh = ph * 0.5
    thw = tw * 0.5
    thh = th * 0.5
    p_l = px - phw
    p_r = px + phw
    p_t = py - phh
    p_b = py + phh
    t_l = tx - thw
    t_r = tx + thw
    t_t = ty - thh
    t_b = ty + thh

    # intersection box
    tl_x = jnp.maximum(p_l, t_l)
    tl_y = jnp.maximum(p_t, t_t)
    br_x = jnp.minimum(p_r, t_r)
    br_y = jnp.minimum(p_b, t_b)

    area_pred = pw * ph
    area_target = tw * th
    en = ((tl_x < br_x) & (tl_y < br_y)).astype(jnp.float32)
    area_inter = (br_x - tl_x) * (br_y - tl_y) * en
    area_union = area_pred + area_target - area_inter
    iou = area_inter * pl.reciprocal(area_union + 1e-16, approx=False)

    if loss_type == "iou":
        return 1.0 - iou * iou

    # smallest enclosing box (shared by giou / ciou)
    c_w = jnp.maximum(p_r, t_r) - jnp.minimum(p_l, t_l)
    c_h = jnp.maximum(p_b, t_b) - jnp.minimum(p_t, t_t)

    if loss_type == "giou":
        area_c = c_w * c_h
        giou = iou - jnp.abs(area_c - area_union) * pl.reciprocal(
            jnp.maximum(area_c, 1e-16), approx=False)
        return 1.0 - jnp.clip(giou, -1.0, 1.0)

    if loss_type == "ciou":
        c2 = jnp.maximum(c_w * c_w + c_h * c_h, 1e-16)
        dx = px - tx
        dy = py - ty
        rho2 = dx * dx + dy * dy
        w1 = jnp.maximum(pw, 1e-7)
        h1 = jnp.maximum(ph, 1e-7)
        w2 = jnp.maximum(tw, 1e-7)
        h2 = jnp.maximum(th, 1e-7)
        # single-arctan subtraction identity:
        #   atan(w2/h2) - atan(w1/h1) == atan((w2*h1 - w1*h2) / (h1*h2 + w1*w2))
        # valid because w, h are clamped positive (denominator > 0, |delta| < pi/2).
        datan = jnp.arctan(
            (w2 * h1 - w1 * h2) * pl.reciprocal(h1 * h2 + w1 * w2, approx=False))
        v = jnp.clip((4.0 / (jnp.pi ** 2)) * datan * datan, 0.0, 1.0)
        # alpha is computed under no_grad in torch; the forward value is identical
        alpha = jnp.clip(
            v * pl.reciprocal(jnp.maximum(1.0 - iou + v, 1e-7), approx=False),
            0.0, 1.0)
        ciou = iou - (rho2 * pl.reciprocal(c2, approx=False) + alpha * v)
        return 1.0 - jnp.clip(ciou, -1.0, 1.0)

    raise NotImplementedError(f"Loss type {loss_type} not implemented.")


def _iou_loss_map_kernel(pred_ref, tgt_ref, out_ref, *, loss_type):
    # reduction == 'none': dense (TR, 128) lane-dense store
    out_ref[...] = _iou_loss_tile(pred_ref, tgt_ref, loss_type=loss_type)


def _iou_loss_sum_kernel(pred_ref, tgt_ref, out_ref, *, loss_type, n, tr):
    # fused masked sum reduction across the grid ('arbitrary' axis accumulator)
    loss = _iou_loss_tile(pred_ref, tgt_ref, loss_type=loss_type)
    i = pl.program_id(0)
    row = jax.lax.broadcasted_iota(jnp.int32, loss.shape, 0)
    lane = jax.lax.broadcasted_iota(jnp.int32, loss.shape, 1)
    box_idx = (i * tr + row) * _LANE + lane
    masked = jnp.where(box_idx < n, loss, 0.0)
    partial = jnp.sum(masked, keepdims=True)  # (1, 1)

    @pl.when(i == 0)
    def _():
        out_ref[...] = jnp.zeros_like(out_ref)

    out_ref[...] += partial


def iou_loss(pred, target, *, loss_type="iou", reduction="none", block_rows=64):
    """JAX/Pallas equivalent of IOUloss(reduction, loss_type)(pred, target)."""
    assert pred.shape[0] == target.shape[0]
    pred = pred.reshape(-1, 4).astype(jnp.float32)
    target = target.reshape(-1, 4).astype(jnp.float32)
    n = pred.shape[0]

    # tiling: rows of 128 boxes; TR rows (multiple of 8) per grid step
    rows = max(1, (n + _LANE - 1) // _LANE)
    block_rows = max(8, ((block_rows + 7) // 8) * 8)
    tr = min(block_rows, ((rows + 7) // 8) * 8)
    r = ((rows + tr - 1) // tr) * tr
    n_pad = r * _LANE
    grid = (r // tr,)

    # single pad + transpose + (free) reshape per operand -> (4, R, 128)
    pred_t = jnp.pad(pred, ((0, n_pad - n), (0, 0))).T.reshape(4, r, _LANE)
    tgt_t = jnp.pad(target, ((0, n_pad - n), (0, 0))).T.reshape(4, r, _LANE)

    in_specs = [
        pl.BlockSpec((4, tr, _LANE), lambda i: (0, i, 0)),
        pl.BlockSpec((4, tr, _LANE), lambda i: (0, i, 0)),
    ]

    if reduction == "none":
        out = pl.pallas_call(
            functools.partial(_iou_loss_map_kernel, loss_type=loss_type),
            out_shape=jax.ShapeDtypeStruct((r, _LANE), jnp.float32),
            grid=grid,
            in_specs=in_specs,
            out_specs=pl.BlockSpec((tr, _LANE), lambda i: (i, 0)),
            compiler_params=pltpu.CompilerParams(
                dimension_semantics=("parallel",)),
        )(pred_t, tgt_t)
        return out.reshape(-1)[:n]

    if reduction not in ("mean", "sum"):
        raise ValueError(f"Unknown reduction {reduction!r}")

    # fused reduction: never materializes the full padded loss in HBM
    total = pl.pallas_call(
        functools.partial(_iou_loss_sum_kernel, loss_type=loss_type, n=n, tr=tr),
        out_shape=jax.ShapeDtypeStruct((1, 1), jnp.float32),
        grid=grid,
        in_specs=in_specs,
        out_specs=pl.BlockSpec((1, 1), lambda i: (0, 0)),
        compiler_params=pltpu.CompilerParams(
            dimension_semantics=("arbitrary",)),
    )(pred_t, tgt_t)[0, 0]

    if reduction == "mean":
        return total / n
    return total


def _reference_iou_loss(pred, target, loss_type):
    # pure-JAX reference mirroring the torch code, for a correctness check
    pred = pred.reshape(-1, 4).astype(jnp.float32)
    target = target.reshape(-1, 4).astype(jnp.float32)
    tl = jnp.maximum(pred[:, :2] - pred[:, 2:] / 2, target[:, :2] - target[:, 2:] / 2)
    br = jnp.minimum(pred[:, :2] + pred[:, 2:] / 2, target[:, :2] + target[:, 2:] / 2)
    area_p = jnp.prod(pred[:, 2:], axis=1)
    area_t = jnp.prod(target[:, 2:], axis=1)
    en = jnp.prod((tl < br).astype(jnp.float32), axis=1)
    area_i = jnp.prod(br - tl, axis=1) * en
    area_u = area_p + area_t - area_i
    iou = area_i / (area_u + 1e-16)
    if loss_type == "iou":
        return 1.0 - iou ** 2
    c_tl = jnp.minimum(pred[:, :2] - pred[:, 2:] / 2, target[:, :2] - target[:, 2:] / 2)
    c_br = jnp.maximum(pred[:, :2] + pred[:, 2:] / 2, target[:, :2] + target[:, 2:] / 2)
    if loss_type == "giou":
        area_c = jnp.prod(c_br - c_tl, axis=1)
        giou = iou - jnp.abs(area_c - area_u) / jnp.maximum(area_c, 1e-16)
        return 1.0 - jnp.clip(giou, -1.0, 1.0)
    if loss_type == "ciou":
        c2 = jnp.maximum(jnp.sum((c_br - c_tl) ** 2, axis=1), 1e-16)
        rho2 = jnp.sum((pred[:, :2] - target[:, :2]) ** 2, axis=1)
        w1, h1 = jnp.maximum(pred[:, 2], 1e-7), jnp.maximum(pred[:, 3], 1e-7)
        w2, h2 = jnp.maximum(target[:, 2], 1e-7), jnp.maximum(target[:, 3], 1e-7)
        v = jnp.clip(4 / jnp.pi ** 2 * (jnp.arctan(w2 / h2) - jnp.arctan(w1 / h1)) ** 2, 0.0, 1.0)
        alpha = jnp.clip(v / jnp.maximum(1 - iou + v, 1e-7), 0.0, 1.0)
        ciou = iou - (rho2 / c2 + alpha * v)
        return 1.0 - jnp.clip(ciou, -1.0, 1.0)
    raise NotImplementedError(loss_type)


def _make_boxes(key, n):
    k1, k2 = jax.random.split(key)
    centers = jax.random.uniform(k1, (n, 2), minval=0.0, maxval=10.0)
    sizes = jax.random.uniform(k2, (n, 2), minval=0.5, maxval=4.0)
    return jnp.concatenate([centers, sizes], axis=1)


if __name__ == "__main__":
    key = jax.random.PRNGKey(0)
    ok = True

    # (n_boxes, block_rows): small case, padded-lane case, and a multi-grid-step
    # case (2000 boxes with 8-row blocks -> 2 grid steps) to exercise both the
    # parallel map path and the 'arbitrary' accumulator path.
    for n, br in ((8, 64), (300, 64), (2000, 8)):
        kp, kt = jax.random.split(jax.random.fold_in(key, n))
        pred = _make_boxes(kp, n)
        target = _make_boxes(kt, n)

        for lt in ("iou", "giou", "ciou"):
            out = jax.block_until_ready(
                iou_loss(pred, target, loss_type=lt, reduction="none", block_rows=br))
            ref = _reference_iou_loss(pred, target, lt)
            if out.shape != (n,) or not jnp.allclose(out, ref, atol=1e-5, rtol=1e-5):
                ok = False

            out_sum = jax.block_until_ready(
                iou_loss(pred, target, loss_type=lt, reduction="sum", block_rows=br))
            out_mean = jax.block_until_ready(
                iou_loss(pred, target, loss_type=lt, reduction="mean", block_rows=br))
            if not jnp.allclose(out_sum, ref.sum(), atol=1e-3, rtol=1e-5):
                ok = False
            if not jnp.allclose(out_mean, ref.mean(), atol=1e-5, rtol=1e-5):
                ok = False

    if ok:
        print("KERNEL_OK")
</pallas_src>

<mosaic_0001>
module attributes {stable_mosaic.version = 11 : i64} {
  func.func @_iou_loss_map_kernel(%arg0: i32, %arg1: memref<4x8x128xf32, #tpu.memory_space<vmem>>, %arg2: memref<4x8x128xf32, #tpu.memory_space<vmem>>, %arg3: memref<8x128xf32, #tpu.memory_space<vmem>>) attributes {dimension_semantics = [#tpu.dimension_semantics<parallel>], iteration_bounds = array<i64: 1>, scalar_prefetch = 0 : i64, scratch_operands = 0 : i64, tpu.core_type = #tpu.core_type<tc>, window_params = [{transform_indices = @transform_0, window_bounds = array<i64: 4, 8, 128>}, {transform_indices = @transform_1, window_bounds = array<i64: 4, 8, 128>}, {transform_indices = @transform_2, window_bounds = array<i64: 8, 128>}]} {
    %c0 = arith.constant 0 : index
    %c0_0 = arith.constant 0 : index
    %c0_1 = arith.constant 0 : index
    %0 = vector.load %arg1[%c0, %c0_0, %c0_1] : memref<4x8x128xf32, #tpu.memory_space<vmem>>, vector<1x8x128xf32>
    %1 = vector.shape_cast %0 : vector<1x8x128xf32> to vector<8x128xf32>
    %c1 = arith.constant 1 : index
    %c0_2 = arith.constant 0 : index
    %c0_3 = arith.constant 0 : index
    %2 = vector.load %arg1[%c1, %c0_2, %c0_3] : memref<4x8x128xf32, #tpu.memory_space<vmem>>, vector<1x8x128xf32>
    %3 = vector.shape_cast %2 : vector<1x8x128xf32> to vector<8x128xf32>
    %c2 = arith.constant 2 : index
    %c0_4 = arith.constant 0 : index
    %c0_5 = arith.constant 0 : index
    %4 = vector.load %arg1[%c2, %c0_4, %c0_5] : memref<4x8x128xf32, #tpu.memory_space<vmem>>, vector<1x8x128xf32>
    %5 = vector.shape_cast %4 : vector<1x8x128xf32> to vector<8x128xf32>
    %c3 = arith.constant 3 : index
    %c0_6 = arith.constant 0 : index
    %c0_7 = arith.constant 0 : index
    %6 = vector.load %arg1[%c3, %c0_6, %c0_7] : memref<4x8x128xf32, #tpu.memory_space<vmem>>, vector<1x8x128xf32>
    %7 = vector.shape_cast %6 : vector<1x8x128xf32> to vector<8x128xf32>
    %c0_8 = arith.constant 0 : index
    %c0_9 = arith.constant 0 : index
    %c0_10 = arith.constant 0 : index
    %8 = vector.load %arg2[%c0_8, %c0_9, %c0_10] : memref<4x8x128xf32, #tpu.memory_space<vmem>>, vector<1x8x128xf32>
    %9 = vector.shape_cast %8 : vector<1x8x128xf32> to vector<8x128xf32>
    %c1_11 = arith.constant 1 : index
    %c0_12 = arith.constant 0 : index
    %c0_13 = arith.constant 0 : index
    %10 = vector.load %arg2[%c1_11, %c0_12, %c0_13] : memref<4x8x128xf32, #tpu.memory_space<vmem>>, vector<1x8x128xf32>
    %11 = vector.shape_cast %10 : vector<1x8x128xf32> to vector<8x128xf32>
    %c2_14 = arith.constant 2 : index
    %c0_15 = arith.constant 0 : index
    %c0_16 = arith.constant 0 : index
    %12 = vector.load %arg2[%c2_14, %c0_15, %c0_16] : memref<4x8x128xf32, #tpu.memory_space<vmem>>, vector<1x8x128xf32>
    %13 = vector.shape_cast %12 : vector<1x8x128xf32> to vector<8x128xf32>
    %c3_17 = arith.constant 3 : index
    %c0_18 = arith.constant 0 : index
    %c0_19 = arith.constant 0 : index
    %14 = vector.load %arg2[%c3_17, %c0_18, %c0_19] : memref<4x8x128xf32, #tpu.memory_space<vmem>>, vector<1x8x128xf32>
    %15 = vector.shape_cast %14 : vector<1x8x128xf32> to vector<8x128xf32>
    %cst = arith.constant 5.000000e-01 : f32
    %16 = vector.broadcast %cst : f32 to vector<8x128xf32>
    %17 = arith.mulf %5, %16 : vector<8x128xf32>
    %cst_20 = arith.constant 5.000000e-01 : f32
    %18 = vector.broadcast %cst_20 : f32 to vector<8x128xf32>
    %19 = arith.mulf %7, %18 : vector<8x128xf32>
    %cst_21 = arith.constant 5.000000e-01 : f32
    %20 = vector.broadcast %cst_21 : f32 to vector<8x128xf32>
    %21 = arith.mulf %13, %20 : vector<8x128xf32>
    %cst_22 = arith.constant 5.000000e-01 : f32
    %22 = vector.broadcast %cst_22 : f32 to vector<8x128xf32>
    %23 = arith.mulf %15, %22 : vector<8x128xf32>
    %24 = arith.subf %1, %17 : vector<8x128xf32>
    %25 = arith.addf %1, %17 : vector<8x128xf32>
    %26 = arith.subf %3, %19 : vector<8x128xf32>
    %27 = arith.addf %3, %19 : vector<8x128xf32>
    %28 = arith.subf %9, %21 : vector<8x128xf32>
    %29 = arith.addf %9, %21 : vector<8x128xf32>
    %30 = arith.subf %11, %23 : vector<8x128xf32>
    %31 = arith.addf %11, %23 : vector<8x128xf32>
    %32 = arith.maximumf %24, %28 : vector<8x128xf32>
    %33 = arith.maximumf %26, %30 : vector<8x128xf32>
    %34 = arith.minimumf %25, %29 : vector<8x128xf32>
    %35 = arith.minimumf %27, %31 : vector<8x128xf32>
    %36 = arith.mulf %5, %7 : vector<8x128xf32>
    %37 = arith.mulf %13, %15 : vector<8x128xf32>
    %38 = arith.cmpf olt, %32, %34 : vector<8x128xf32>
    %39 = arith.cmpf olt, %33, %35 : vector<8x128xf32>
    %40 = arith.andi %38, %39 : vector<8x128xi1>
    %41 = arith.extui %40 : vector<8x128xi1> to vector<8x128xi32>
    %42 = arith.sitofp %41 : vector<8x128xi32> to vector<8x128xf32>
    %43 = arith.subf %34, %32 : vector<8x128xf32>
    %44 = arith.subf %35, %33 : vector<8x128xf32>
    %45 = arith.mulf %43, %44 : vector<8x128xf32>
    %46 = arith.mulf %45, %42 : vector<8x128xf32>
    %47 = arith.addf %36, %37 : vector<8x128xf32>
    %48 = arith.subf %47, %46 : vector<8x128xf32>
    %cst_23 = arith.constant 1.000000e-16 : f32
    %49 = vector.broadcast %cst_23 : f32 to vector<8x128xf32>
    %50 = arith.addf %48, %49 : vector<8x128xf32>
    %51 = tpu.reciprocal %50 : vector<8x128xf32> -> vector<8x128xf32>
    %52 = arith.mulf %46, %51 : vector<8x128xf32>
    %53 = arith.mulf %52, %52 : vector<8x128xf32>
    %cst_24 = arith.constant 1.000000e+00 : f32
    %54 = vector.broadcast %cst_24 : f32 to vector<8x128xf32>
    %55 = arith.subf %54, %53 : vector<8x128xf32>
    %c0_25 = arith.constant 0 : index
    %c0_26 = arith.constant 0 : index
    %56 = vector.load %arg3[%c0_25, %c0_26] : memref<8x128xf32, #tpu.memory_space<vmem>>, vector<8x128xf32>
    tpu.vector_store %arg3[%c0_25, %c0_26], %55 {strides = array<i32>} : memref<8x128xf32, #tpu.memory_space<vmem>>, vector<8x128xf32>,
    return
  }
  func.func @transform_0(%arg0: i32) -> (i32, i32, i32) {
    %c0_i32 = arith.constant 0 : i32
    %c0_i32_0 = arith.constant 0 : i32
    %c0_i32_1 = arith.constant 0 : i32
    return %c0_i32, %arg0, %c0_i32_0 : i32, i32, i32
  }
  func.func @transform_1(%arg0: i32) -> (i32, i32, i32) {
    %c0_i32 = arith.constant 0 : i32
    %c0_i32_0 = arith.constant 0 : i32
    %c0_i32_1 = arith.constant 0 : i32
    return %c0_i32, %arg0, %c0_i32_0 : i32, i32, i32
  }
  func.func @transform_2(%arg0: i32) -> (i32, i32) {
    %c0_i32 = arith.constant 0 : i32
    %c0_i32_0 = arith.constant 0 : i32
    return %arg0, %c0_i32 : i32, i32
  }
}

</mosaic_0001>

<llo_original>
// kernel: tpu_custom_call.1
$region0: #{tpu_custom_call.1}
  #allocation0 [shape = 'u32[]', space=smem, size = 0x4, offset = 0x4, fixed_abs, tag = 'smem constant byte address 0x4 - core index']
  #allocation1 [shape = 'u32[144,128]{1,0:T(1,128)}', space=vmem, size = 0x12000, scoped, tag = 'internal scratch']
  %s0 = inlined_call_operand.hbm [shape: f32[4,8,128], index: 0, kind: input, shape index: {}]
  %s1 = inlined_call_operand.hbm [shape: f32[4,8,128], index: 1, kind: input, shape index: {}]
  %s2 = inlined_call_operand.hbm [shape: f32[8,128], index: 2, kind: output, shape index: {}]
  %s3 = sld [smem:[#allocation0]]
  $region26: #{tpu_custom_call.1} parent=0
    _
  %s5 = ssub.s32 1, %s3
  %s6 = scalar_select 0, %s5, %s3
  $region1: #{tpu_custom_call.1} parent=0
    #allocation2 [shape = 'u8[16384]{0}', space=vmem, size = 0x4000, scoped, tag = 'input window, operand 0, single buffered']
    #allocation3 [shape = 's32[1]{0}', space=sflag, size = 0x4, scoped, tag = 'scoped memory for tpu_custom_call.1']
    #allocation4 [shape = 's32[1]{0}', space=sflag, size = 0x4, scoped, tag = 'scoped memory for tpu_custom_call.1']
    #allocation5 [shape = 'u8[16384]{0}', space=vmem, size = 0x4000, scoped, tag = 'input window, operand 1, single buffered']
    #allocation6 [shape = 's32[1]{0}', space=sflag, size = 0x4, scoped, tag = 'scoped memory for tpu_custom_call.1']
    #allocation7 [shape = 'u8[4096]{0}', space=vmem, size = 0x1000, scoped, tag = 'output window, operand 0, single buffered']
    %7 = vsyncpa [#allocation3], 0
    %8 = vsyncpa [#allocation6], 0
    %9 = vsyncpa [#allocation4], 0
    // Predicated region
    $region2: #{tpu_custom_call.1} parent=1 // pred_check
      _
    $region3: #{tpu_custom_call.1} parent=1 // pred_check_branch
      %11 = sbr.rel (0) target = $region5
    $region4: #{tpu_custom_call.1} parent=1 // pred_region
      %s13 = ssub.s32 512, 512
      %14 = vsyncadd [#allocation3], %s13
      %s15 = sshll.u32 [#allocation2], 4
      %s16 = int_to_ptr.vmem [resolvable:$true] %s15
      %21 = dma.hbm_to_vmem [thread:$0]  %s0, 512, %s16, [#allocation3], 128, 128, 8
    $region5: #{tpu_custom_call.1} parent=1 // pred_fallthru
      _
    // Predicated region
    $region6: #{tpu_custom_call.1} parent=1 // pred_check
      _
    $region7: #{tpu_custom_call.1} parent=1 // pred_check_branch
      %23 = sbr.rel (0) target = $region9
    $region8: #{tpu_custom_call.1} parent=1 // pred_region
      %s25 = ssub.s32 512, 512
      %26 = vsyncadd [#allocation6], %s25
      %s27 = sshll.u32 [#allocation5], 4
      %s28 = int_to_ptr.vmem [resolvable:$true] %s27
      %33 = dma.hbm_to_vmem [thread:$0]  %s1, 512, %s28, [#allocation6], 128, 128, 8
    $region9: #{tpu_custom_call.1} parent=1 // pred_fallthru
      _
    // Predicated region
    $region10: #{tpu_custom_call.1} parent=1 // pred_check
      _
    $region11: #{tpu_custom_call.1} parent=1 // pred_check_branch
      %35 = sbr.rel (0) target = $region13
    $region12: #{tpu_custom_call.1} parent=1 // pred_region
      %36 = dma.done [#allocation3], 512
    $region13: #{tpu_custom_call.1} parent=1 // pred_fallthru
      _
    // Predicated region
    $region14: #{tpu_custom_call.1} parent=1 // pred_check
      _
    $region15: #{tpu_custom_call.1} parent=1 // pred_check_branch
      %38 = sbr.rel (0) target = $region17
    $region16: #{tpu_custom_call.1} parent=1 // pred_region
      %39 = dma.done [#allocation6], 512
    $region17: #{tpu_custom_call.1} parent=1 // pred_fallthru
      _
    %v40 = vld [vmem:[#allocation2] sm:$0xff]
    %s41 = scalar_lea.vmem [#allocation2], 8
    %v42 = vld [vmem:[%s41] sm:$0xff]
    %s43 = scalar_lea.vmem [#allocation2], 16
    %v44 = vld [vmem:[%s43] sm:$0xff]
    %s45 = scalar_lea.vmem [#allocation2], 24
    %v46 = vld [vmem:[%s45] sm:$0xff]
    %v47 = vld [vmem:[#allocation5] sm:$0xff]
    %s48 = scalar_lea.vmem [#allocation5], 8
    %v49 = vld [vmem:[%s48] sm:$0xff]
    %s50 = scalar_lea.vmem [#allocation5], 16
    %v51 = vld [vmem:[%s50] sm:$0xff]
    %s52 = scalar_lea.vmem [#allocation5], 24
    %v53 = vld [vmem:[%s52] sm:$0xff]
    %v54 = vmul.f32 %v44, 0.5
    %v55 = vmul.f32 %v46, 0.5
    %v56 = vmul.f32 %v51, 0.5
    %v57 = vmul.f32 %v53, 0.5
    %v58 = vsub.f32 %v40, %v54
    %v59 = vadd.f32 %v40, %v54
    %v60 = vsub.f32 %v42, %v55
    %v61 = vadd.f32 %v42, %v55
    %v62 = vsub.f32 %v47, %v56
    %v63 = vadd.f32 %v47, %v56
    %v64 = vsub.f32 %v49, %v57
    %v65 = vadd.f32 %v49, %v57
    %v66 = vmax.f32 %v58, %v62
    %v67 = vmax.f32 %v60, %v64
    %v68 = vmin.f32 %v59, %v63
    %v69 = vmin.f32 %v61, %v65
    %v70 = vmul.f32 %v44, %v46
    %v71 = vmul.f32 %v51, %v53
    %vm72 = vcmp.lt.f32.partialorder %v66, %v68
    %vm73 = vcmp.lt.f32.partialorder %v67, %v69
    %vm74 = vmand %vm72, %vm73
    %v75 = vsel %vm74, 1, 0
    %v76 = vcvt.s32.f32 %v75
    %v77 = vsub.f32 %v68, %v66
    %v78 = vsub.f32 %v69, %v67
    %v79 = vmul.f32 %v77, %v78
    %v80 = vmul.f32 %v79, %v76
    %v81 = vadd.f32 %v70, %v71
    %v82 = vsub.f32 %v81, %v80
    %v83 = vadd.f32 %v82, 1e-16
    %v84 = vrcp.pop %v83
    %v85 = vmul.f32 %v80, %v84
    %v86 = vmul.f32 %v85, %v85
    %v87 = vsub.f32 1.0, %v86
    %88 = vst [vmem:[#allocation7] sm:$0xff] %v87
    // Predicated region
    $region18: #{tpu_custom_call.1} parent=1 // pred_check
      _
    $region19: #{tpu_custom_call.1} parent=1 // pred_check_branch
      %90 = sbr.rel (0) target = $region21
    $region20: #{tpu_custom_call.1} parent=1 // pred_region
      %s92 = ssub.s32 128, 128
      %93 = vsyncadd [#allocation4], %s92
      %s95 = sshll.u32 [#allocation7], 4
      %s96 = int_to_ptr.vmem [resolvable:$true] %s95
      %98 = dma.vmem_to_hbm [thread:$0]  %s96, 128, %s2, [#allocation4]
    $region21: #{tpu_custom_call.1} parent=1 // pred_fallthru
      _
    // Predicated region
    $region22: #{tpu_custom_call.1} parent=1 // pred_check
      _
    $region23: #{tpu_custom_call.1} parent=1 // pred_check_branch
      %100 = sbr.rel (0) target = $region25
    $region24: #{tpu_custom_call.1} parent=1 // pred_region
      %101 = dma.done [#allocation4], 128
    $region25: #{tpu_custom_call.1} parent=1 // pred_fallthru
      _
    %102 = vsyncpa [#allocation3], 1
    %103 = vsyncpa [#allocation6], 1
    %104 = vsyncpa [#allocation4], 1

</llo_original>
